<compile_context>
chip_gen: v6e
topology: v6e:2x2x1
jax: 0.10.0
libtpu: 0.0.40
codegen_flags: <defaults>
</compile_context>

<pallas_src>
import functools

import jax
import jax.numpy as jnp
from jax import lax
from jax.experimental import pallas as pl
from jax.experimental.pallas import tpu as pltpu

NEG_INF = -1e30
LANE = 128


def _round_up(v, m):
    return ((v + m - 1) // m) * m


def _fused_gat_kernel(x_ref, mask_ref, w_ref, b_ref, out_ref, xwt_scr, *,
                      num_layers, heads, out_ch, negative_slope):
    n = mask_ref.shape[0]
    f_pad = x_ref.shape[1]
    out_w = w_ref.shape[2]             # augmented-weight lane width (>= H*C + 2H)
    out_slab = out_ref.shape[1]        # lane-dense output slab width (128)
    hc = heads * out_ch

    # Column-index iota for the one-hot a_dst selection (hoisted out of loops).
    col_ids = lax.broadcasted_iota(jnp.int32, (out_w, 1), 0)

    # Activations live as a traced value across the (static) layer loop.
    h = x_ref[...]                                            # (N, F_PAD)
    logits = None

    for li in range(num_layers):                              # static unroll (L small)
        # ONE MXU matmul per layer: every head's (1/H-scaled) features plus both
        # attention-logit projections fall out of the same vmatmul.
        xw_all = jnp.dot(h, w_ref[li], preferred_element_type=jnp.float32)

        # ONE transpose per layer into a VMEM scratch; all (1, N) rows needed by
        # the head/channel loops are dynamic-sublane slices of this scratch.
        xwt_scr[...] = xw_all.T                               # (OUT_W, N)

        def head_body(hd, acc_cols):
            # a_src as a (1, N) row: dynamic sublane slice (cheap, no relayout).
            a_src = xwt_scr[pl.ds(hc + hd, 1), :]             # (1, N)

            # a_dst as an (N, 1) column via a one-hot MXU dot (MXU is idle here),
            # avoiding a per-head lane->sublane relayout or dynamic lane slice.
            onehot = (col_ids == (hc + heads + hd)).astype(jnp.float32)
            a_dst = jnp.dot(xw_all, onehot,
                            preferred_element_type=jnp.float32)   # (N, 1)

            # e[i, j] = leaky_relu(a_dst[i] + a_src[j]) + additive edge mask.
            e = a_dst + a_src                                 # (N, N)
            e = jnp.maximum(e, negative_slope * e)            # leaky relu
            e = e + mask_ref[...]                             # 0 / -1e30 from host

            # Masked edge softmax over incoming sources j (masked entries -> 0).
            row_max = jnp.max(e, axis=1, keepdims=True)
            p = jnp.exp(e - row_max)
            denom = jnp.sum(p, axis=1, keepdims=True)
            alpha = p * pl.reciprocal(denom, approx=True)     # (N, N), EUP slot

            # aggr='max': out[i, c] = max_{j in N(i)} alpha[i, j] * (x_j W_h)[c]
            # (the 1/H heads-mean is already folded into W on the host).
            new_cols = []
            for c in range(out_ch):                           # static, C small
                xw_row = xwt_scr[pl.ds(hd * out_ch + c, 1), :]    # (1, N)
                msg = alpha * xw_row + mask_ref[...]          # exclude non-edges
                new_cols.append(acc_cols[c] +
                                jnp.max(msg, axis=1, keepdims=True))
            return tuple(new_cols)

        init_cols = tuple(jnp.zeros((n, 1), jnp.float32) for _ in range(out_ch))
        # fori_loop bounds the live range of each head's (N, N) temporaries.
        acc_cols = lax.fori_loop(0, heads, head_body, init_cols)

        acc = jnp.concatenate(list(acc_cols), axis=1)         # (N, C), once/layer
        layer_out = acc + b_ref[li]                           # heads-mean already in W

        if li < num_layers - 1:
            # ReLU, then pad back to a full lane-dense (N, F_PAD) slab so the
            # next layer's matmul input has explicit zeros beyond C.
            h = jnp.concatenate(
                [jnp.maximum(layer_out, 0.0),
                 jnp.zeros((n, f_pad - out_ch), jnp.float32)], axis=1)
        else:
            logits = layer_out

    # F.log_softmax(x, dim=1); store lane-dense (N, 128) slab (sliced in wrapper).
    m = jnp.max(logits, axis=1, keepdims=True)
    ex = jnp.exp(logits - m)
    lse = jnp.log(jnp.sum(ex, axis=1, keepdims=True)) + m
    logp = logits - lse
    out_ref[...] = jnp.concatenate(
        [logp, jnp.zeros((n, out_slab - out_ch), jnp.float32)], axis=1)


def _augment_weight(w, att_src, att_dst, f_pad, out_pad, inv_heads):
    """Pack per-head weights and attention projections into one matmul RHS.

    Column layout: [head0 C feats | ... | head{H-1} C feats | H src | H dst].
    The feature block is pre-scaled by 1/H so the summed per-head max-aggregated
    messages directly equal the heads-mean (concat=False); attention projections
    stay unscaled.
    """
    h, f_in, c = w.shape
    w_flat = jnp.transpose(w, (1, 0, 2)).reshape(f_in, h * c) * inv_heads
    a_src_proj = jnp.einsum('hfc,hc->fh', w, att_src)            # (F, H)
    a_dst_proj = jnp.einsum('hfc,hc->fh', w, att_dst)            # (F, H)
    w_aug = jnp.concatenate([w_flat, a_src_proj, a_dst_proj], axis=1)
    return jnp.pad(w_aug, ((0, f_pad - f_in), (0, out_pad - w_aug.shape[1])))


def gat_model_forward(x, adj, params):
    n, f_in = x.shape
    num_layers = len(params)
    heads, _, out_ch = params[0]["w"].shape

    n_pad = _round_up(max(n, 8), 8)
    max_in = max(p["w"].shape[1] for p in params)
    f_pad = _round_up(max(max_in, out_ch, 8), LANE)            # MXU K dim
    out_pad = _round_up(heads * out_ch + 2 * heads, LANE)      # augmented RHS width
    out_slab = _round_up(out_ch, LANE)                         # lane-dense out slab

    inv_heads = 1.0 / float(heads)
    w_all = jnp.stack(
        [_augment_weight(p["w"], p["att_src"], p["att_dst"],
                         f_pad, out_pad, inv_heads) for p in params], axis=0)
    b_all = jnp.stack([p["bias"] for p in params], axis=0)     # (L, 1, C)

    x_pad = jnp.pad(x.astype(jnp.float32),
                    ((0, n_pad - n), (0, f_pad - f_in)))

    # Additive edge mask built ONCE on the host: 0 on edges, -1e30 elsewhere
    # (padded rows/cols fully masked).  Single f32 resident (N,N) operand.
    mask = jnp.where(adj > 0, 0.0, NEG_INF).astype(jnp.float32)
    mask = jnp.pad(mask, ((0, n_pad - n), (0, n_pad - n)),
                   constant_values=NEG_INF)

    kernel = functools.partial(
        _fused_gat_kernel, num_layers=num_layers, heads=heads,
        out_ch=out_ch, negative_slope=0.2)

    # Scoped-VMEM limit: resident footprint + headroom for (N,N) temporaries,
    # clamped to [32 MiB, 64 MiB] so it is valid on v5e/v6e/v7x alike.
    est_bytes = 4 * (n_pad * n_pad                 # additive mask
                     + n_pad * f_pad               # activations
                     + num_layers * f_pad * out_pad
                     + out_pad * n_pad             # transposed scratch
                     + n_pad * out_slab            # output slab
                     + 6 * n_pad * n_pad)          # (N,N) temporaries headroom
    vmem_limit = int(min(max(2 * est_bytes, 32 * 1024 * 1024), 64 * 1024 * 1024))

    cost = pl.CostEstimate(
        flops=int(num_layers * (2 * n_pad * f_pad * out_pad
                                + heads * n_pad * n_pad * (7 + 3 * out_ch))),
        transcendentals=int(num_layers * heads * n_pad * n_pad),
        bytes_accessed=int(4 * (n_pad * n_pad + n_pad * f_pad
                                + num_layers * f_pad * out_pad
                                + n_pad * out_slab)))

    out = pl.pallas_call(
        kernel,
        out_shape=jax.ShapeDtypeStruct((n_pad, out_slab), jnp.float32),
        in_specs=[pl.BlockSpec(memory_space=pltpu.MemorySpace.VMEM)] * 4,
        out_specs=pl.BlockSpec(memory_space=pltpu.MemorySpace.VMEM),
        scratch_shapes=[pltpu.VMEM((out_pad, n_pad), jnp.float32)],
        compiler_params=pltpu.CompilerParams(vmem_limit_bytes=vmem_limit),
        cost_estimate=cost,
    )(x_pad, mask, w_all, b_all)

    return out[:n, :out_ch]


def init_gat_params(key, num_features, num_classes, num_layers):
    heads = 2 * num_classes
    hidden = num_classes
    params = []
    in_dim = num_features
    for _ in range(num_layers):
        key, kw, ks, kd = jax.random.split(key, 4)
        limit_w = (6.0 / (in_dim + hidden)) ** 0.5
        limit_a = (6.0 / (1 + hidden)) ** 0.5
        params.append(dict(
            w=jax.random.uniform(kw, (heads, in_dim, hidden),
                                 minval=-limit_w, maxval=limit_w,
                                 dtype=jnp.float32),
            att_src=jax.random.uniform(ks, (heads, hidden),
                                       minval=-limit_a, maxval=limit_a,
                                       dtype=jnp.float32),
            att_dst=jax.random.uniform(kd, (heads, hidden),
                                       minval=-limit_a, maxval=limit_a,
                                       dtype=jnp.float32),
            bias=jnp.zeros((1, hidden), dtype=jnp.float32),
        ))
        in_dim = hidden
    return params


if __name__ == "__main__":
    key = jax.random.PRNGKey(0)
    N, F, NUM_CLASSES, NUM_LAYERS, E = 16, 8, 4, 2, 40

    key, kx, ke_src, ke_dst, kp = jax.random.split(key, 5)
    x = jax.random.normal(kx, (N, F), dtype=jnp.float32)

    # data.edge_index : [2, E]  (row 0 = source j, row 1 = target i)
    src = jax.random.randint(ke_src, (E,), 0, N)
    dst = jax.random.randint(ke_dst, (E,), 0, N)

    # dense adjacency mask (j -> i) with self-loops (GATConv add_self_loops=True)
    adj = jnp.zeros((N, N), dtype=jnp.float32).at[dst, src].set(1.0)
    adj = jnp.maximum(adj, jnp.eye(N, dtype=jnp.float32))

    params = init_gat_params(kp, F, NUM_CLASSES, NUM_LAYERS)

    out = gat_model_forward(x, adj, params)
    out = jax.block_until_ready(out)

    assert out.shape == (N, NUM_CLASSES)
    assert bool(jnp.all(jnp.isfinite(out)))
    # rows of log_softmax must sum to 1 in prob space
    assert bool(jnp.allclose(jnp.sum(jnp.exp(out), axis=1), 1.0, atol=1e-4))
    print("KERNEL_OK")
</pallas_src>

<mosaic_0001>
module attributes {stable_mosaic.version = 11 : i64} {
  func.func @_fused_gat_kernel(%arg0: memref<16x128xf32, #tpu.memory_space<vmem>>, %arg1: memref<16x16xf32, #tpu.memory_space<vmem>>, %arg2: memref<2x128x128xf32, #tpu.memory_space<vmem>>, %arg3: memref<2x1x4xf32, #tpu.memory_space<vmem>>, %arg4: memref<16x128xf32, #tpu.memory_space<vmem>>, %arg5: memref<128x16xf32, #tpu.memory_space<vmem>>) attributes {dimension_semantics = [], scalar_prefetch = 0 : i64, scratch_operands = 1 : i64, tpu.core_type = #tpu.core_type<tc>} {
    %0 = tpu.iota {dimensions = array<i32: 0>} : vector<128x1xi32>
    %c0 = arith.constant 0 : index
    %c0_0 = arith.constant 0 : index
    %1 = vector.load %arg0[%c0, %c0_0] : memref<16x128xf32, #tpu.memory_space<vmem>>, vector<16x128xf32>
    %c0_1 = arith.constant 0 : index
    %c0_2 = arith.constant 0 : index
    %c0_3 = arith.constant 0 : index
    %2 = vector.load %arg2[%c0_1, %c0_2, %c0_3] : memref<2x128x128xf32, #tpu.memory_space<vmem>>, vector<1x128x128xf32>
    %3 = vector.shape_cast %2 : vector<1x128x128xf32> to vector<128x128xf32>
    %cst = arith.constant dense<0.000000e+00> : vector<16x128xf32>
    %4 = tpu.matmul %1, %3, %cst {dimension_numbers = #tpu.dot_dimension_numbers<[1], [0], [0], [1], [0, 0, 1, 1], [], []>} : vector<16x128xf32>, vector<128x128xf32>, vector<16x128xf32> -> vector<16x128xf32>
    %5 = tpu.transpose %4, [1, 0] : vector<16x128xf32> -> vector<128x16xf32>
    %c0_4 = arith.constant 0 : index
    %c0_5 = arith.constant 0 : index
    %6 = vector.load %arg5[%c0_4, %c0_5] : memref<128x16xf32, #tpu.memory_space<vmem>>, vector<128x16xf32>
    tpu.vector_store %arg5[%c0_4, %c0_5], %5 {strides = array<i32>} : memref<128x16xf32, #tpu.memory_space<vmem>>, vector<128x16xf32>,
    %cst_6 = arith.constant 0.000000e+00 : f32
    %7 = vector.broadcast %cst_6 : f32 to vector<16x1xf32>
    %cst_7 = arith.constant 0.000000e+00 : f32
    %8 = vector.broadcast %cst_7 : f32 to vector<16x1xf32>
    %cst_8 = arith.constant 0.000000e+00 : f32
    %9 = vector.broadcast %cst_8 : f32 to vector<16x1xf32>
    %cst_9 = arith.constant 0.000000e+00 : f32
    %10 = vector.broadcast %cst_9 : f32 to vector<16x1xf32>
    %c0_i32 = arith.constant 0 : i32
    %c8_i32 = arith.constant 8 : i32
    %11 = arith.addi %c0_i32, %c8_i32 : i32
    %c1_i32 = arith.constant 1 : i32
    %12:4 = scf.for %arg6 = %c0_i32 to %11 step %c1_i32 iter_args(%arg7 = %7, %arg8 = %8, %arg9 = %9, %arg10 = %10) -> (vector<16x1xf32>, vector<16x1xf32>, vector<16x1xf32>, vector<16x1xf32>)  : i32 {
      %c32_i32 = arith.constant 32 : i32
      %52 = arith.addi %c32_i32, %arg6 : i32
      %53 = arith.index_cast %52 : i32 to index
      %c0_37 = arith.constant 0 : index
      %54 = vector.load %arg5[%53, %c0_37] : memref<128x16xf32, #tpu.memory_space<vmem>>, vector<1x16xf32>
      %c40_i32 = arith.constant 40 : i32
      %55 = arith.addi %c40_i32, %arg6 : i32
      %56 = vector.broadcast %55 : i32 to vector<128x1xi32>
      %57 = arith.cmpi eq, %0, %56 : vector<128x1xi32>
      %58 = arith.extui %57 : vector<128x1xi1> to vector<128x1xi32>
      %59 = arith.sitofp %58 : vector<128x1xi32> to vector<128x1xf32>
      %cst_38 = arith.constant dense<0.000000e+00> : vector<16x1xf32>
      %60 = tpu.matmul %4, %59, %cst_38 {dimension_numbers = #tpu.dot_dimension_numbers<[1], [0], [0], [1], [0, 0, 1, 1], [], []>} : vector<16x128xf32>, vector<128x1xf32>, vector<16x1xf32> -> vector<16x1xf32>
      %61 = vector.broadcast %60 : vector<16x1xf32> to vector<16x16xf32>
      %62 = vector.broadcast %54 : vector<1x16xf32> to vector<16x16xf32>
      %63 = arith.addf %61, %62 : vector<16x16xf32>
      %cst_39 = arith.constant 2.000000e-01 : f32
      %64 = vector.broadcast %cst_39 : f32 to vector<16x16xf32>
      %65 = arith.mulf %64, %63 : vector<16x16xf32>
      %66 = arith.maximumf %63, %65 : vector<16x16xf32>
      %c0_40 = arith.constant 0 : index
      %c0_41 = arith.constant 0 : index
      %67 = vector.load %arg1[%c0_40, %c0_41] : memref<16x16xf32, #tpu.memory_space<vmem>>, vector<16x16xf32>
      %68 = arith.addf %66, %67 : vector<16x16xf32>
      %cst_42 = arith.constant dense<0xFF800000> : vector<16xf32>
      %69 = vector.multi_reduction <maximumf>, %68, %cst_42 [1] : vector<16x16xf32> to vector<16xf32>
      %70 = vector.shape_cast %69 : vector<16xf32> to vector<16x1xf32>
      %71 = vector.broadcast %70 : vector<16x1xf32> to vector<16x16xf32>
      %72 = arith.subf %68, %71 : vector<16x16xf32>
      %73 = math.exp %72 : vector<16x16xf32>
      %cst_43 = arith.constant dense<0.000000e+00> : vector<16xf32>
      %74 = vector.multi_reduction <add>, %73, %cst_43 [1] : vector<16x16xf32> to vector<16xf32>
      %75 = vector.shape_cast %74 : vector<16xf32> to vector<16x1xf32>
      %76 = tpu.reciprocal %75 {approx = true} : vector<16x1xf32> -> vector<16x1xf32>
      %77 = vector.broadcast %76 : vector<16x1xf32> to vector<16x16xf32>
      %78 = arith.mulf %73, %77 : vector<16x16xf32>
      %c4_i32 = arith.constant 4 : i32
      %79 = arith.muli %arg6, %c4_i32 : i32
      %c0_i32_44 = arith.constant 0 : i32
      %80 = arith.addi %79, %c0_i32_44 : i32
      %81 = arith.index_cast %80 : i32 to index
      %c0_45 = arith.constant 0 : index
      %82 = vector.load %arg5[%81, %c0_45] : memref<128x16xf32, #tpu.memory_space<vmem>>, vector<1x16xf32>
      %83 = vector.broadcast %82 : vector<1x16xf32> to vector<16x16xf32>
      %84 = arith.mulf %78, %83 : vector<16x16xf32>
      %c0_46 = arith.constant 0 : index
      %c0_47 = arith.constant 0 : index
      %85 = vector.load %arg1[%c0_46, %c0_47] : memref<16x16xf32, #tpu.memory_space<vmem>>, vector<16x16xf32>
      %86 = arith.addf %84, %85 : vector<16x16xf32>
      %cst_48 = arith.constant dense<0xFF800000> : vector<16xf32>
      %87 = vector.multi_reduction <maximumf>, %86, %cst_48 [1] : vector<16x16xf32> to vector<16xf32>
      %88 = vector.shape_cast %87 : vector<16xf32> to vector<16x1xf32>
      %89 = arith.addf %arg7, %88 : vector<16x1xf32>
      %c4_i32_49 = arith.constant 4 : i32
      %90 = arith.muli %arg6, %c4_i32_49 : i32
      %c1_i32_50 = arith.constant 1 : i32
      %91 = arith.addi %90, %c1_i32_50 : i32
      %92 = arith.index_cast %91 : i32 to index
      %c0_51 = arith.constant 0 : index
      %93 = vector.load %arg5[%92, %c0_51] : memref<128x16xf32, #tpu.memory_space<vmem>>, vector<1x16xf32>
      %94 = vector.broadcast %93 : vector<1x16xf32> to vector<16x16xf32>
      %95 = arith.mulf %78, %94 : vector<16x16xf32>
      %c0_52 = arith.constant 0 : index
      %c0_53 = arith.constant 0 : index
      %96 = vector.load %arg1[%c0_52, %c0_53] : memref<16x16xf32, #tpu.memory_space<vmem>>, vector<16x16xf32>
      %97 = arith.addf %95, %96 : vector<16x16xf32>
      %cst_54 = arith.constant dense<0xFF800000> : vector<16xf32>
      %98 = vector.multi_reduction <maximumf>, %97, %cst_54 [1] : vector<16x16xf32> to vector<16xf32>
      %99 = vector.shape_cast %98 : vector<16xf32> to vector<16x1xf32>
      %100 = arith.addf %arg8, %99 : vector<16x1xf32>
      %c4_i32_55 = arith.constant 4 : i32
      %101 = arith.muli %arg6, %c4_i32_55 : i32
      %c2_i32 = arith.constant 2 : i32
      %102 = arith.addi %101, %c2_i32 : i32
      %103 = arith.index_cast %102 : i32 to index
      %c0_56 = arith.constant 0 : index
      %104 = vector.load %arg5[%103, %c0_56] : memref<128x16xf32, #tpu.memory_space<vmem>>, vector<1x16xf32>
      %105 = vector.broadcast %104 : vector<1x16xf32> to vector<16x16xf32>
      %106 = arith.mulf %78, %105 : vector<16x16xf32>
      %c0_57 = arith.constant 0 : index
      %c0_58 = arith.constant 0 : index
      %107 = vector.load %arg1[%c0_57, %c0_58] : memref<16x16xf32, #tpu.memory_space<vmem>>, vector<16x16xf32>
      %108 = arith.addf %106, %107 : vector<16x16xf32>
      %cst_59 = arith.constant dense<0xFF800000> : vector<16xf32>
      %109 = vector.multi_reduction <maximumf>, %108, %cst_59 [1] : vector<16x16xf32> to vector<16xf32>
      %110 = vector.shape_cast %109 : vector<16xf32> to vector<16x1xf32>
      %111 = arith.addf %arg9, %110 : vector<16x1xf32>
      %c4_i32_60 = arith.constant 4 : i32
      %112 = arith.muli %arg6, %c4_i32_60 : i32
      %c3_i32 = arith.constant 3 : i32
      %113 = arith.addi %112, %c3_i32 : i32
      %114 = arith.index_cast %113 : i32 to index
      %c0_61 = arith.constant 0 : index
      %115 = vector.load %arg5[%114, %c0_61] : memref<128x16xf32, #tpu.memory_space<vmem>>, vector<1x16xf32>
      %116 = vector.broadcast %115 : vector<1x16xf32> to vector<16x16xf32>
      %117 = arith.mulf %78, %116 : vector<16x16xf32>
      %c0_62 = arith.constant 0 : index
      %c0_63 = arith.constant 0 : index
      %118 = vector.load %arg1[%c0_62, %c0_63] : memref<16x16xf32, #tpu.memory_space<vmem>>, vector<16x16xf32>
      %119 = arith.addf %117, %118 : vector<16x16xf32>
      %cst_64 = arith.constant dense<0xFF800000> : vector<16xf32>
      %120 = vector.multi_reduction <maximumf>, %119, %cst_64 [1] : vector<16x16xf32> to vector<16xf32>
      %121 = vector.shape_cast %120 : vector<16xf32> to vector<16x1xf32>
      %122 = arith.addf %arg10, %121 : vector<16x1xf32>
      scf.yield %89, %100, %111, %122 : vector<16x1xf32>, vector<16x1xf32>, vector<16x1xf32>, vector<16x1xf32>
    }
    %c8_i32_10 = arith.constant 8 : i32
    %13 = tpu.concatenate %12#0, %12#1, %12#2, %12#3 in 1 : vector<16x1xf32>, vector<16x1xf32>, vector<16x1xf32>, vector<16x1xf32> -> vector<16x4xf32>
    %c0_11 = arith.constant 0 : index
    %c0_12 = arith.constant 0 : index
    %c0_13 = arith.constant 0 : index
    %14 = vector.load %arg3[%c0_11, %c0_12, %c0_13] : memref<2x1x4xf32, #tpu.memory_space<vmem>>, vector<1x1x4xf32>
    %15 = vector.shape_cast %14 : vector<1x1x4xf32> to vector<1x4xf32>
    %16 = vector.broadcast %15 : vector<1x4xf32> to vector<16x4xf32>
    %17 = arith.addf %13, %16 : vector<16x4xf32>
    %cst_14 = arith.constant 0.000000e+00 : f32
    %18 = vector.broadcast %cst_14 : f32 to vector<16x4xf32>
    %19 = arith.maximumf %17, %18 : vector<16x4xf32>
    %cst_15 = arith.constant 0.000000e+00 : f32
    %20 = vector.broadcast %cst_15 : f32 to vector<16x124xf32>
    %21 = tpu.concatenate %19, %20 in 1 : vector<16x4xf32>, vector<16x124xf32> -> vector<16x128xf32>
    %c1 = arith.constant 1 : index
    %c0_16 = arith.constant 0 : index
    %c0_17 = arith.constant 0 : index
    %22 = vector.load %arg2[%c1, %c0_16, %c0_17] : memref<2x128x128xf32, #tpu.memory_space<vmem>>, vector<1x128x128xf32>
    %23 = vector.shape_cast %22 : vector<1x128x128xf32> to vector<128x128xf32>
    %cst_18 = arith.constant dense<0.000000e+00> : vector<16x128xf32>
    %24 = tpu.matmul %21, %23, %cst_18 {dimension_numbers = #tpu.dot_dimension_numbers<[1], [0], [0], [1], [0, 0, 1, 1], [], []>} : vector<16x128xf32>, vector<128x128xf32>, vector<16x128xf32> -> vector<16x128xf32>
    %25 = tpu.transpose %24, [1, 0] : vector<16x128xf32> -> vector<128x16xf32>
    %c0_19 = arith.constant 0 : index
    %c0_20 = arith.constant 0 : index
    %26 = vector.load %arg5[%c0_19, %c0_20] : memref<128x16xf32, #tpu.memory_space<vmem>>, vector<128x16xf32>
    tpu.vector_store %arg5[%c0_19, %c0_20], %25 {strides = array<i32>} : memref<128x16xf32, #tpu.memory_space<vmem>>, vector<128x16xf32>,
    %cst_21 = arith.constant 0.000000e+00 : f32
    %27 = vector.broadcast %cst_21 : f32 to vector<16x1xf32>
    %cst_22 = arith.constant 0.000000e+00 : f32
    %28 = vector.broadcast %cst_22 : f32 to vector<16x1xf32>
    %cst_23 = arith.constant 0.000000e+00 : f32
    %29 = vector.broadcast %cst_23 : f32 to vector<16x1xf32>
    %cst_24 = arith.constant 0.000000e+00 : f32
    %30 = vector.broadcast %cst_24 : f32 to vector<16x1xf32>
    %c0_i32_25 = arith.constant 0 : i32
    %c8_i32_26 = arith.constant 8 : i32
    %31 = arith.addi %c0_i32_25, %c8_i32_26 : i32
    %c1_i32_27 = arith.constant 1 : i32
    %32:4 = scf.for %arg6 = %c0_i32_25 to %31 step %c1_i32_27 iter_args(%arg7 = %27, %arg8 = %28, %arg9 = %29, %arg10 = %30) -> (vector<16x1xf32>, vector<16x1xf32>, vector<16x1xf32>, vector<16x1xf32>)  : i32 {
      %c32_i32 = arith.constant 32 : i32
      %52 = arith.addi %c32_i32, %arg6 : i32
      %53 = arith.index_cast %52 : i32 to index
      %c0_37 = arith.constant 0 : index
      %54 = vector.load %arg5[%53, %c0_37] : memref<128x16xf32, #tpu.memory_space<vmem>>, vector<1x16xf32>
      %c40_i32 = arith.constant 40 : i32
      %55 = arith.addi %c40_i32, %arg6 : i32
      %56 = vector.broadcast %55 : i32 to vector<128x1xi32>
      %57 = arith.cmpi eq, %0, %56 : vector<128x1xi32>
      %58 = arith.extui %57 : vector<128x1xi1> to vector<128x1xi32>
      %59 = arith.sitofp %58 : vector<128x1xi32> to vector<128x1xf32>
      %cst_38 = arith.constant dense<0.000000e+00> : vector<16x1xf32>
      %60 = tpu.matmul %24, %59, %cst_38 {dimension_numbers = #tpu.dot_dimension_numbers<[1], [0], [0], [1], [0, 0, 1, 1], [], []>} : vector<16x128xf32>, vector<128x1xf32>, vector<16x1xf32> -> vector<16x1xf32>
      %61 = vector.broadcast %60 : vector<16x1xf32> to vector<16x16xf32>
      %62 = vector.broadcast %54 : vector<1x16xf32> to vector<16x16xf32>
      %63 = arith.addf %61, %62 : vector<16x16xf32>
      %cst_39 = arith.constant 2.000000e-01 : f32
      %64 = vector.broadcast %cst_39 : f32 to vector<16x16xf32>
      %65 = arith.mulf %64, %63 : vector<16x16xf32>
      %66 = arith.maximumf %63, %65 : vector<16x16xf32>
      %c0_40 = arith.constant 0 : index
      %c0_41 = arith.constant 0 : index
      %67 = vector.load %arg1[%c0_40, %c0_41] : memref<16x16xf32, #tpu.memory_space<vmem>>, vector<16x16xf32>
      %68 = arith.addf %66, %67 : vector<16x16xf32>
      %cst_42 = arith.constant dense<0xFF800000> : vector<16xf32>
      %69 = vector.multi_reduction <maximumf>, %68, %cst_42 [1] : vector<16x16xf32> to vector<16xf32>
      %70 = vector.shape_cast %69 : vector<16xf32> to vector<16x1xf32>
      %71 = vector.broadcast %70 : vector<16x1xf32> to vector<16x16xf32>
      %72 = arith.subf %68, %71 : vector<16x16xf32>
      %73 = math.exp %72 : vector<16x16xf32>
      %cst_43 = arith.constant dense<0.000000e+00> : vector<16xf32>
      %74 = vector.multi_reduction <add>, %73, %cst_43 [1] : vector<16x16xf32> to vector<16xf32>
      %75 = vector.shape_cast %74 : vector<16xf32> to vector<16x1xf32>
      %76 = tpu.reciprocal %75 {approx = true} : vector<16x1xf32> -> vector<16x1xf32>
      %77 = vector.broadcast %76 : vector<16x1xf32> to vector<16x16xf32>
      %78 = arith.mulf %73, %77 : vector<16x16xf32>
      %c4_i32 = arith.constant 4 : i32
      %79 = arith.muli %arg6, %c4_i32 : i32
      %c0_i32_44 = arith.constant 0 : i32
      %80 = arith.addi %79, %c0_i32_44 : i32
      %81 = arith.index_cast %80 : i32 to index
      %c0_45 = arith.constant 0 : index
      %82 = vector.load %arg5[%81, %c0_45] : memref<128x16xf32, #tpu.memory_space<vmem>>, vector<1x16xf32>
      %83 = vector.broadcast %82 : vector<1x16xf32> to vector<16x16xf32>
      %84 = arith.mulf %78, %83 : vector<16x16xf32>
      %c0_46 = arith.constant 0 : index
      %c0_47 = arith.constant 0 : index
      %85 = vector.load %arg1[%c0_46, %c0_47] : memref<16x16xf32, #tpu.memory_space<vmem>>, vector<16x16xf32>
      %86 = arith.addf %84, %85 : vector<16x16xf32>
      %cst_48 = arith.constant dense<0xFF800000> : vector<16xf32>
      %87 = vector.multi_reduction <maximumf>, %86, %cst_48 [1] : vector<16x16xf32> to vector<16xf32>
      %88 = vector.shape_cast %87 : vector<16xf32> to vector<16x1xf32>
      %89 = arith.addf %arg7, %88 : vector<16x1xf32>
      %c4_i32_49 = arith.constant 4 : i32
      %90 = arith.muli %arg6, %c4_i32_49 : i32
      %c1_i32_50 = arith.constant 1 : i32
      %91 = arith.addi %90, %c1_i32_50 : i32
      %92 = arith.index_cast %91 : i32 to index
      %c0_51 = arith.constant 0 : index
      %93 = vector.load %arg5[%92, %c0_51] : memref<128x16xf32, #tpu.memory_space<vmem>>, vector<1x16xf32>
      %94 = vector.broadcast %93 : vector<1x16xf32> to vector<16x16xf32>
      %95 = arith.mulf %78, %94 : vector<16x16xf32>
      %c0_52 = arith.constant 0 : index
      %c0_53 = arith.constant 0 : index
      %96 = vector.load %arg1[%c0_52, %c0_53] : memref<16x16xf32, #tpu.memory_space<vmem>>, vector<16x16xf32>
      %97 = arith.addf %95, %96 : vector<16x16xf32>
      %cst_54 = arith.constant dense<0xFF800000> : vector<16xf32>
      %98 = vector.multi_reduction <maximumf>, %97, %cst_54 [1] : vector<16x16xf32> to vector<16xf32>
      %99 = vector.shape_cast %98 : vector<16xf32> to vector<16x1xf32>
      %100 = arith.addf %arg8, %99 : vector<16x1xf32>
      %c4_i32_55 = arith.constant 4 : i32
      %101 = arith.muli %arg6, %c4_i32_55 : i32
      %c2_i32 = arith.constant 2 : i32
      %102 = arith.addi %101, %c2_i32 : i32
      %103 = arith.index_cast %102 : i32 to index
      %c0_56 = arith.constant 0 : index
      %104 = vector.load %arg5[%103, %c0_56] : memref<128x16xf32, #tpu.memory_space<vmem>>, vector<1x16xf32>
      %105 = vector.broadcast %104 : vector<1x16xf32> to vector<16x16xf32>
      %106 = arith.mulf %78, %105 : vector<16x16xf32>
      %c0_57 = arith.constant 0 : index
      %c0_58 = arith.constant 0 : index
      %107 = vector.load %arg1[%c0_57, %c0_58] : memref<16x16xf32, #tpu.memory_space<vmem>>, vector<16x16xf32>
      %108 = arith.addf %106, %107 : vector<16x16xf32>
      %cst_59 = arith.constant dense<0xFF800000> : vector<16xf32>
      %109 = vector.multi_reduction <maximumf>, %108, %cst_59 [1] : vector<16x16xf32> to vector<16xf32>
      %110 = vector.shape_cast %109 : vector<16xf32> to vector<16x1xf32>
      %111 = arith.addf %arg9, %110 : vector<16x1xf32>
      %c4_i32_60 = arith.constant 4 : i32
      %112 = arith.muli %arg6, %c4_i32_60 : i32
      %c3_i32 = arith.constant 3 : i32
      %113 = arith.addi %112, %c3_i32 : i32
      %114 = arith.index_cast %113 : i32 to index
      %c0_61 = arith.constant 0 : index
      %115 = vector.load %arg5[%114, %c0_61] : memref<128x16xf32, #tpu.memory_space<vmem>>, vector<1x16xf32>
      %116 = vector.broadcast %115 : vector<1x16xf32> to vector<16x16xf32>
      %117 = arith.mulf %78, %116 : vector<16x16xf32>
      %c0_62 = arith.constant 0 : index
      %c0_63 = arith.constant 0 : index
      %118 = vector.load %arg1[%c0_62, %c0_63] : memref<16x16xf32, #tpu.memory_space<vmem>>, vector<16x16xf32>
      %119 = arith.addf %117, %118 : vector<16x16xf32>
      %cst_64 = arith.constant dense<0xFF800000> : vector<16xf32>
      %120 = vector.multi_reduction <maximumf>, %119, %cst_64 [1] : vector<16x16xf32> to vector<16xf32>
      %121 = vector.shape_cast %120 : vector<16xf32> to vector<16x1xf32>
      %122 = arith.addf %arg10, %121 : vector<16x1xf32>
      scf.yield %89, %100, %111, %122 : vector<16x1xf32>, vector<16x1xf32>, vector<16x1xf32>, vector<16x1xf32>
    }
    %c8_i32_28 = arith.constant 8 : i32
    %33 = tpu.concatenate %32#0, %32#1, %32#2, %32#3 in 1 : vector<16x1xf32>, vector<16x1xf32>, vector<16x1xf32>, vector<16x1xf32> -> vector<16x4xf32>
    %c1_29 = arith.constant 1 : index
    %c0_30 = arith.constant 0 : index
    %c0_31 = arith.constant 0 : index
    %34 = vector.load %arg3[%c1_29, %c0_30, %c0_31] : memref<2x1x4xf32, #tpu.memory_space<vmem>>, vector<1x1x4xf32>
    %35 = vector.shape_cast %34 : vector<1x1x4xf32> to vector<1x4xf32>
    %36 = vector.broadcast %35 : vector<1x4xf32> to vector<16x4xf32>
    %37 = arith.addf %33, %36 : vector<16x4xf32>
    %cst_32 = arith.constant dense<0xFF800000> : vector<16xf32>
    %38 = vector.multi_reduction <maximumf>, %37, %cst_32 [1] : vector<16x4xf32> to vector<16xf32>
    %39 = vector.shape_cast %38 : vector<16xf32> to vector<16x1xf32>
    %40 = vector.broadcast %39 : vector<16x1xf32> to vector<16x4xf32>
    %41 = arith.subf %37, %40 : vector<16x4xf32>
    %42 = math.exp %41 : vector<16x4xf32>
    %cst_33 = arith.constant dense<0.000000e+00> : vector<16xf32>
    %43 = vector.multi_reduction <add>, %42, %cst_33 [1] : vector<16x4xf32> to vector<16xf32>
    %44 = vector.shape_cast %43 : vector<16xf32> to vector<16x1xf32>
    %45 = math.log %44 : vector<16x1xf32>
    %46 = arith.addf %45, %39 : vector<16x1xf32>
    %47 = vector.broadcast %46 : vector<16x1xf32> to vector<16x4xf32>
    %48 = arith.subf %37, %47 : vector<16x4xf32>
    %cst_34 = arith.constant 0.000000e+00 : f32
    %49 = vector.broadcast %cst_34 : f32 to vector<16x124xf32>
    %50 = tpu.concatenate %48, %49 in 1 : vector<16x4xf32>, vector<16x124xf32> -> vector<16x128xf32>
    %c0_35 = arith.constant 0 : index
    %c0_36 = arith.constant 0 : index
    %51 = vector.load %arg4[%c0_35, %c0_36] : memref<16x128xf32, #tpu.memory_space<vmem>>, vector<16x128xf32>
    tpu.vector_store %arg4[%c0_35, %c0_36], %50 {strides = array<i32>} : memref<16x128xf32, #tpu.memory_space<vmem>>, vector<16x128xf32>,
    return
  }
}

</mosaic_0001>

<llo_original>
// kernel: tpu_custom_call.1
$region0: #{tpu_custom_call.1}
  #allocation0 [shape = 'u32[]', space=smem, size = 0x4, offset = 0x4, fixed_abs, tag = 'smem constant byte address 0x4 - core index']
  #allocation1 [shape = 'u32[144,128]{1,0:T(1,128)}', space=vmem, size = 0x12000, scoped, tag = 'internal scratch']
  #allocation2 [shape = 'f32[128,16]{1,0:T(8,128)}', space=vmem, size = 0x10000, scoped, tag = 'scratch operand']
  %s0 = inlined_call_operand.hbm [shape: f32[16,128], index: 0, kind: input, shape index: {}]
  %s1 = inlined_call_operand.hbm [shape: f32[16,16], index: 1, kind: input, shape index: {}]
  %s2 = inlined_call_operand.hbm [shape: f32[2,128,128], index: 2, kind: input, shape index: {}]
  %s3 = inlined_call_operand.vmem [shape: f32[2,1,4], index: 3, kind: input, shape index: {}]
  %s4 = inlined_call_operand.hbm [shape: f32[16,128], index: 4, kind: output, shape index: {}]
  %s5 = sld [smem:[#allocation0]]
  $region52: #{tpu_custom_call.1} parent=0
    _
  %s7 = ssub.s32 1, %s5
  %s8 = scalar_select 0, %s7, %s5
  $region1: #{tpu_custom_call.1} parent=0
    #allocation3 [shape = 'u8[8192]{0}', space=vmem, size = 0x2000, scoped, tag = 'input window, operand 0, single buffered']
    #allocation4 [shape = 's32[1]{0}', space=sflag, size = 0x4, scoped, tag = 'scoped memory for tpu_custom_call.1']
    #allocation5 [shape = 's32[1]{0}', space=sflag, size = 0x4, scoped, tag = 'scoped memory for tpu_custom_call.1']
    #allocation6 [shape = 'u8[8192]{0}', space=vmem, size = 0x2000, scoped, tag = 'input window, operand 1, single buffered']
    #allocation7 [shape = 's32[1]{0}', space=sflag, size = 0x4, scoped, tag = 'scoped memory for tpu_custom_call.1']
    #allocation8 [shape = 'u8[131072]{0}', space=vmem, size = 0x20000, scoped, tag = 'input window, operand 2, single buffered']
    #allocation9 [shape = 'u8[8192]{0}', space=vmem, size = 0x2000, scoped, tag = 'output window, operand 0, single buffered']
    %9 = vsyncpa [#allocation4], 0
    %10 = vsyncpa [#allocation7], 0
    %11 = vsyncpa [#allocation5], 0
    // Predicated region
    $region2: #{tpu_custom_call.1} parent=1 // pred_check
      _
    $region3: #{tpu_custom_call.1} parent=1 // pred_check_branch
      %13 = sbr.rel (0) target = $region5
    $region4: #{tpu_custom_call.1} parent=1 // pred_region
      %s15 = ssub.s32 256, 256
      %16 = vsyncadd [#allocation4], %s15
      %s17 = sshll.u32 [#allocation3], 4
      %s18 = int_to_ptr.vmem [resolvable:$true] %s17
      %23 = dma.hbm_to_vmem [thread:$0]  %s0, 256, %s18, [#allocation4], 128, 128, 8
    $region5: #{tpu_custom_call.1} parent=1 // pred_fallthru
      _
    // Predicated region
    $region6: #{tpu_custom_call.1} parent=1 // pred_check
      _
    $region7: #{tpu_custom_call.1} parent=1 // pred_check_branch
      %25 = sbr.rel (0) target = $region9
    $region8: #{tpu_custom_call.1} parent=1 // pred_region
      %s27 = ssub.s32 256, 256
      %28 = vsyncadd [#allocation7], %s27
      %s29 = sshll.u32 [#allocation6], 4
      %s30 = int_to_ptr.vmem [resolvable:$true] %s29
      %35 = dma.hbm_to_vmem [thread:$0]  %s1, 256, %s30, [#allocation7], 128, 128, 8
    $region9: #{tpu_custom_call.1} parent=1 // pred_fallthru
      _
    // Predicated region
    $region10: #{tpu_custom_call.1} parent=1 // pred_check
      _
    $region11: #{tpu_custom_call.1} parent=1 // pred_check_branch
      %37 = sbr.rel (0) target = $region13
    $region12: #{tpu_custom_call.1} parent=1 // pred_region
      %s39 = ssub.s32 4096, 4096
      %40 = vsyncadd [#allocation7], %s39
      %s41 = sshll.u32 [#allocation8], 4
      %s42 = int_to_ptr.vmem [resolvable:$true] %s41
      %47 = dma.hbm_to_vmem [thread:$0]  %s2, 4096, %s42, [#allocation7], 128, 128, 8
    $region13: #{tpu_custom_call.1} parent=1 // pred_fallthru
      _
    // Predicated region
    $region14: #{tpu_custom_call.1} parent=1 // pred_check
      _
    $region15: #{tpu_custom_call.1} parent=1 // pred_check_branch
      %49 = sbr.rel (0) target = $region17
    $region16: #{tpu_custom_call.1} parent=1 // pred_region
      _
    $region17: #{tpu_custom_call.1} parent=1 // pred_fallthru
      _
    // Predicated region
    $region18: #{tpu_custom_call.1} parent=1 // pred_check
      _
    $region19: #{tpu_custom_call.1} parent=1 // pred_check_branch
      %51 = sbr.rel (0) target = $region21
    $region20: #{tpu_custom_call.1} parent=1 // pred_region
      %52 = dma.done [#allocation4], 256
    $region21: #{tpu_custom_call.1} parent=1 // pred_fallthru
      _
    // Predicated region
    $region22: #{tpu_custom_call.1} parent=1 // pred_check
      _
    $region23: #{tpu_custom_call.1} parent=1 // pred_check_branch
      %54 = sbr.rel (0) target = $region25
    $region24: #{tpu_custom_call.1} parent=1 // pred_region
      %55 = dma.done [#allocation7], 256
    $region25: #{tpu_custom_call.1} parent=1 // pred_fallthru
      _
    // Predicated region
    $region26: #{tpu_custom_call.1} parent=1 // pred_check
      _
    $region27: #{tpu_custom_call.1} parent=1 // pred_check_branch
      %57 = sbr.rel (0) target = $region29
    $region28: #{tpu_custom_call.1} parent=1 // pred_region
      %58 = dma.done [#allocation7], 4096
    $region29: #{tpu_custom_call.1} parent=1 // pred_fallthru
      _
    %v59 = vlaneseq
    %v60 = vshrl.u32 %v59, 7
    %v61 = vadd.s32 %v60, 8
    %v62 = vadd.s32 %v60, 16
    %v63 = vadd.s32 %v60, 24
    %v64 = vadd.s32 %v60, 32
    %v65 = vadd.s32 %v60, 40
    %v66 = vadd.s32 %v60, 48
    %v67 = vadd.s32 %v60, 56
    %v68 = vadd.s32 %v60, 64
    %v69 = vadd.s32 %v60, 72
    %v70 = vadd.s32 %v60, 80
    %v71 = vadd.s32 %v60, 88
    %v72 = vadd.s32 %v60, 96
    %v73 = vadd.s32 %v60, 104
    %v74 = vadd.s32 %v60, 112
    %v75 = vadd.s32 %v60, 120
    %v76 = vld [vmem:[#allocation3] sm:$0xff]
    %v77 = vld [vmem:[#allocation3 + $0x8] sm:$0xff]
    %v78 = vld [vmem:[#allocation8] sm:$0xff]
    %v79 = vld [vmem:[#allocation8 + $0x8] sm:$0xff]
    %v80 = vld [vmem:[#allocation8 + $0x10] sm:$0xff]
    %v81 = vld [vmem:[#allocation8 + $0x18] sm:$0xff]
    %v82 = vld [vmem:[#allocation8 + $0x20] sm:$0xff]
    %v83 = vld [vmem:[#allocation8 + $0x28] sm:$0xff]
    %v84 = vld [vmem:[#allocation8 + $0x30] sm:$0xff]
    %v85 = vld [vmem:[#allocation8 + $0x38] sm:$0xff]
    %v86 = vld [vmem:[#allocation8 + $0x40] sm:$0xff]
    %v87 = vld [vmem:[#allocation8 + $0x48] sm:$0xff]
    %v88 = vld [vmem:[#allocation8 + $0x50] sm:$0xff]
    %v89 = vld [vmem:[#allocation8 + $0x58] sm:$0xff]
    %v90 = vld [vmem:[#allocation8 + $0x60] sm:$0xff]
    %v91 = vld [vmem:[#allocation8 + $0x68] sm:$0xff]
    %v92 = vld [vmem:[#allocation8 + $0x70] sm:$0xff]
    %v93 = vld [vmem:[#allocation8 + $0x78] sm:$0xff]
    %94 = vmatprep.subr.mxu0 0.0
    %95 = vmatpush1.msra.mxu0 %v93
    %96 = vmatprep.subr.mxu0 0.0
    %97 = vmatpush1.msra.mxu0 %v92
    %98 = vmatprep.subr.mxu0 0.0
    %99 = vmatpush1.msra.mxu0 %v91
    %100 = vmatprep.subr.mxu0 0.0
    %101 = vmatpush1.msra.mxu0 %v90
    %102 = vmatprep.subr.mxu0 0.0
    %103 = vmatpush1.msra.mxu0 %v89
    %104 = vmatprep.subr.mxu0 0.0
    %105 = vmatpush1.msra.mxu0 %v88
    %106 = vmatprep.subr.mxu0 0.0
    %107 = vmatpush1.msra.mxu0 %v87
    %108 = vmatprep.subr.mxu0 0.0
    %109 = vmatpush1.msra.mxu0 %v86
    %110 = vmatprep.subr.mxu0 0.0
    %111 = vmatpush1.msra.mxu0 %v85
    %112 = vmatprep.subr.mxu0 0.0
    %113 = vmatpush1.msra.mxu0 %v84
    %114 = vmatprep.subr.mxu0 0.0
    %115 = vmatpush1.msra.mxu0 %v83
    %116 = vmatprep.subr.mxu0 0.0
    %117 = vmatpush1.msra.mxu0 %v82
    %118 = vmatprep.subr.mxu0 0.0
    %119 = vmatpush1.msra.mxu0 %v81
    %120 = vmatprep.subr.mxu0 0.0
    %121 = vmatpush1.msra.mxu0 %v80
    %122 = vmatprep.subr.mxu0 0.0
    %123 = vmatpush1.msra.mxu0 %v79
    %124 = vmatprep.subr.mxu0 0.0
    %125 = vmatpush1.msra.mxu0 %v78
    %126 = vmatprep.subr.mxu0 0.0
    %127 = vmatpush2.msra.mxu0 0.0
    %128 = vmatprep.subr.mxu0 0.0
    %129 = vmatpush2.msra.mxu0 0.0
    %130 = vmatprep.subr.mxu0 0.0
    %131 = vmatpush2.msra.mxu0 0.0
    %132 = vmatprep.subr.mxu0 0.0
    %133 = vmatpush2.msra.mxu0 0.0
    %134 = vmatprep.subr.mxu0 0.0
    %135 = vmatpush2.msra.mxu0 0.0
    %136 = vmatprep.subr.mxu0 0.0
    %137 = vmatpush2.msra.mxu0 0.0
    %138 = vmatprep.subr.mxu0 0.0
    %139 = vmatpush2.msra.mxu0 0.0
    %140 = vmatprep.subr.mxu0 0.0
    %141 = vmatpush2.msra.mxu0 0.0
    %142 = vmatprep.subr.mxu0 0.0
    %143 = vmatpush2.msra.mxu0 0.0
    %144 = vmatprep.subr.mxu0 0.0
    %145 = vmatpush2.msra.mxu0 0.0
    %146 = vmatprep.subr.mxu0 0.0
    %147 = vmatpush2.msra.mxu0 0.0
    %148 = vmatprep.subr.mxu0 0.0
    %149 = vmatpush2.msra.mxu0 0.0
    %150 = vmatprep.subr.mxu0 0.0
    %151 = vmatpush2.msra.mxu0 0.0
    %152 = vmatprep.subr.mxu0 0.0
    %153 = vmatpush2.msra.mxu0 0.0
    %154 = vmatprep.subr.mxu0 0.0
    %155 = vmatpush2.msra.mxu0 0.0
    %156 = vmatprep.subr.mxu0 0.0
    %157 = vmatpush2.msra.mxu0 0.0
    %158 = vmatprep.mubr.f32.mxu0 0.0
    %159 = vmatmul.mubr.f32.gmra.mxu0 %v76
    %v160 = vpop.f32.mrf.mxu0
    %v161 = vadd.f32 0.0, %v160
    %v162 = vpop.f32.mrf.mxu0
    %163 = vmatprep.mubr.f32.mxu0 0.0
    %164 = vmatmul.mubr.f32.gmra.mxu0 %v77
    %v165 = vpop.f32.mrf.mxu0
    %v166 = vadd.f32 0.0, %v165
    %v167 = vpop.f32.mrf.mxu0
    %168 = vdwg.mxu0
    %169 = vxpose.xlu0.b32.start [1/16] %v161, 128
    %170 = vxpose.xlu0.b32.cont [2/16] %v166, 128
    %171 = vxpose.xlu0.b32.cont [3/16] 0.0, 128
    %172 = vxpose.xlu0.b32.cont [4/16] 0.0, 128
    %173 = vxpose.xlu0.b32.cont [5/16] 0.0, 128
    %174 = vxpose.xlu0.b32.cont [6/16] 0.0, 128
    %175 = vxpose.xlu0.b32.cont [7/16] 0.0, 128
    %176 = vxpose.xlu0.b32.cont [8/16] 0.0, 128
    %177 = vxpose.xlu0.b32.cont [9/16] 0.0, 128
    %178 = vxpose.xlu0.b32.cont [10/16] 0.0, 128
    %179 = vxpose.xlu0.b32.cont [11/16] 0.0, 128
    %180 = vxpose.xlu0.b32.cont [12/16] 0.0, 128
    %181 = vxpose.xlu0.b32.cont [13/16] 0.0, 128
    %182 = vxpose.xlu0.b32.cont [14/16] 0.0, 128
    %183 = vxpose.xlu0.b32.cont [15/16] 0.0, 128
    %184 = vxpose.xlu0.b32.end [16/16] 0.0, 128
    %v185 = vpop.trf.xlu0
    %v186 = vpop.trf.xlu0
    %v187 = vpop.trf.xlu0
    %v188 = vpop.trf.xlu0
    %v189 = vpop.trf.xlu0
    %v190 = vpop.trf.xlu0
    %v191 = vpop.trf.xlu0
    %v192 = vpop.trf.xlu0
    %v193 = vpop.trf.xlu0
    %v194 = vpop.trf.xlu0
    %v195 = vpop.trf.xlu0
    %v196 = vpop.trf.xlu0
    %v197 = vpop.trf.xlu0
    %v198 = vpop.trf.xlu0
    %v199 = vpop.trf.xlu0
    %v200 = vpop.trf.xlu0
    %vm201 = vcmask 130048
    %202 = vst.msk [vmem:[#allocation2] sm:$0xff] %vm201, %v185
    %203 = vst.msk [vmem:[#allocation2 + $0x8] sm:$0xff] %vm201, %v186
    %204 = vst.msk [vmem:[#allocation2 + $0x10] sm:$0xff] %vm201, %v187
    %205 = vst.msk [vmem:[#allocation2 + $0x18] sm:$0xff] %vm201, %v188
    %206 = vst.msk [vmem:[#allocation2 + $0x20] sm:$0xff] %vm201, %v189
    %207 = vst.msk [vmem:[#allocation2 + $0x28] sm:$0xff] %vm201, %v190
    %208 = vst.msk [vmem:[#allocation2 + $0x30] sm:$0xff] %vm201, %v191
    %209 = vst.msk [vmem:[#allocation2 + $0x38] sm:$0xff] %vm201, %v192
    %210 = vst.msk [vmem:[#allocation2 + $0x40] sm:$0xff] %vm201, %v193
    %211 = vst.msk [vmem:[#allocation2 + $0x48] sm:$0xff] %vm201, %v194
    %212 = vst.msk [vmem:[#allocation2 + $0x50] sm:$0xff] %vm201, %v195
    %213 = vst.msk [vmem:[#allocation2 + $0x58] sm:$0xff] %vm201, %v196
    %214 = vst.msk [vmem:[#allocation2 + $0x60] sm:$0xff] %vm201, %v197
    %215 = vst.msk [vmem:[#allocation2 + $0x68] sm:$0xff] %vm201, %v198
    %216 = vst.msk [vmem:[#allocation2 + $0x70] sm:$0xff] %vm201, %v199
    %217 = vst.msk [vmem:[#allocation2 + $0x78] sm:$0xff] %vm201, %v200
    loop: start=0, step=1, limit=8
    $region30: #{tpu_custom_call.1} parent=1 // loop_pre_header
      _
    $region31: #{tpu_custom_call.1} parent=1 // loop_header
      %s219 = sphi 0, %s223
      %p220 = scmp.ge.s32.totalorder %s219, 8
      %v224 = vphi 0.0, %v423
      %v225 = vphi 0.0, %v424
      %v226 = vphi 0.0, %v442
      %v227 = vphi 0.0, %v443
      %v228 = vphi 0.0, %v461
      %v229 = vphi 0.0, %v462
      %v230 = vphi 0.0, %v480
      %v231 = vphi 0.0, %v481
    $region32: #{tpu_custom_call.1} parent=1 // loop_header_branch
      %222 = sbr.rel (%p220) target = $region36
    $region33: #{tpu_custom_call.1} parent=1 // loop_body
      %s232 = sadd.s32 %s219, 32
      %s233 = scalar_lea.vmem [#allocation2], %s232
      %v234 = vld [vmem:[%s233] sm:$0x1]
      %s235 = sadd.s32 %s219, 40
      %v236 = vstv %s235
      %vm237 = vcmp.eq.s32.totalorder %v60, %v236
      %vm238 = vcmp.eq.s32.totalorder %v61, %v236
      %vm239 = vcmp.eq.s32.totalorder %v62, %v236
      %vm240 = vcmp.eq.s32.totalorder %v63, %v236
      %vm241 = vcmp.eq.s32.totalorder %v64, %v236
      %vm242 = vcmp.eq.s32.totalorder %v65, %v236
      %vm243 = vcmp.eq.s32.totalorder %v66, %v236
      %vm244 = vcmp.eq.s32.totalorder %v67, %v236
      %vm245 = vcmp.eq.s32.totalorder %v68, %v236
      %vm246 = vcmp.eq.s32.totalorder %v69, %v236
      %vm247 = vcmp.eq.s32.totalorder %v70, %v236
      %vm248 = vcmp.eq.s32.totalorder %v71, %v236
      %vm249 = vcmp.eq.s32.totalorder %v72, %v236
      %vm250 = vcmp.eq.s32.totalorder %v73, %v236
      %vm251 = vcmp.eq.s32.totalorder %v74, %v236
      %vm252 = vcmp.eq.s32.totalorder %v75, %v236
      %v253 = vsel %vm237, 1, 0
      %v254 = vsel %vm238, 1, 0
      %v255 = vsel %vm239, 1, 0
      %v256 = vsel %vm240, 1, 0
      %v257 = vsel %vm241, 1, 0
      %v258 = vsel %vm242, 1, 0
      %v259 = vsel %vm243, 1, 0
      %v260 = vsel %vm244, 1, 0
      %v261 = vsel %vm245, 1, 0
      %v262 = vsel %vm246, 1, 0
      %v263 = vsel %vm247, 1, 0
      %v264 = vsel %vm248, 1, 0
      %v265 = vsel %vm249, 1, 0
      %v266 = vsel %vm250, 1, 0
      %v267 = vsel %vm251, 1, 0
      %v268 = vsel %vm252, 1, 0
      %v269 = vcvt.s32.f32 %v253
      %v270 = vcvt.s32.f32 %v254
      %v271 = vcvt.s32.f32 %v255
      %v272 = vcvt.s32.f32 %v256
      %v273 = vcvt.s32.f32 %v257
      %v274 = vcvt.s32.f32 %v258
      %v275 = vcvt.s32.f32 %v259
      %v276 = vcvt.s32.f32 %v260
      %v277 = vcvt.s32.f32 %v261
      %v278 = vcvt.s32.f32 %v262
      %v279 = vcvt.s32.f32 %v263
      %v280 = vcvt.s32.f32 %v264
      %v281 = vcvt.s32.f32 %v265
      %v282 = vcvt.s32.f32 %v266
      %v283 = vcvt.s32.f32 %v267
      %v284 = vcvt.s32.f32 %v268
      %285 = vmatprep.subr.mxu0 0.0
      %286 = vmatpush1.msra.mxu0 %v284
      %287 = vmatprep.subr.mxu0 0.0
      %288 = vmatpush1.msra.mxu0 %v283
      %289 = vmatprep.subr.mxu0 0.0
      %290 = vmatpush1.msra.mxu0 %v282
      %291 = vmatprep.subr.mxu0 0.0
      %292 = vmatpush1.msra.mxu0 %v281
      %293 = vmatprep.subr.mxu0 0.0
      %294 = vmatpush1.msra.mxu0 %v280
      %295 = vmatprep.subr.mxu0 0.0
      %296 = vmatpush1.msra.mxu0 %v279
      %297 = vmatprep.subr.mxu0 0.0
      %298 = vmatpush1.msra.mxu0 %v278
      %299 = vmatprep.subr.mxu0 0.0
      %300 = vmatpush1.msra.mxu0 %v277
      %301 = vmatprep.subr.mxu0 0.0
      %302 = vmatpush1.msra.mxu0 %v276
      %303 = vmatprep.subr.mxu0 0.0
      %304 = vmatpush1.msra.mxu0 %v275
      %305 = vmatprep.subr.mxu0 0.0
      %306 = vmatpush1.msra.mxu0 %v274
      %307 = vmatprep.subr.mxu0 0.0
      %308 = vmatpush1.msra.mxu0 %v273
      %309 = vmatprep.subr.mxu0 0.0
      %310 = vmatpush1.msra.mxu0 %v272
      %311 = vmatprep.subr.mxu0 0.0
      %312 = vmatpush1.msra.mxu0 %v271
      %313 = vmatprep.subr.mxu0 0.0
      %314 = vmatpush1.msra.mxu0 %v270
      %315 = vmatprep.subr.mxu0 0.0
      %316 = vmatpush1.msra.mxu0 %v269
      %317 = vmatprep.subr.mxu0 0.0
      %318 = vmatpush2.msra.mxu0 0.0
      %319 = vmatprep.subr.mxu0 0.0
      %320 = vmatpush2.msra.mxu0 0.0
      %321 = vmatprep.subr.mxu0 0.0
      %322 = vmatpush2.msra.mxu0 0.0
      %323 = vmatprep.subr.mxu0 0.0
      %324 = vmatpush2.msra.mxu0 0.0
      %325 = vmatprep.subr.mxu0 0.0
      %326 = vmatpush2.msra.mxu0 0.0
      %327 = vmatprep.subr.mxu0 0.0
      %328 = vmatpush2.msra.mxu0 0.0
      %329 = vmatprep.subr.mxu0 0.0
      %330 = vmatpush2.msra.mxu0 0.0
      %331 = vmatprep.subr.mxu0 0.0
      %332 = vmatpush2.msra.mxu0 0.0
      %333 = vmatprep.subr.mxu0 0.0
      %334 = vmatpush2.msra.mxu0 0.0
      %335 = vmatprep.subr.mxu0 0.0
      %336 = vmatpush2.msra.mxu0 0.0
      %337 = vmatprep.subr.mxu0 0.0
      %338 = vmatpush2.msra.mxu0 0.0
      %339 = vmatprep.subr.mxu0 0.0
      %340 = vmatpush2.msra.mxu0 0.0
      %341 = vmatprep.subr.mxu0 0.0
      %342 = vmatpush2.msra.mxu0 0.0
      %343 = vmatprep.subr.mxu0 0.0
      %344 = vmatpush2.msra.mxu0 0.0
      %345 = vmatprep.subr.mxu0 0.0
      %346 = vmatpush2.msra.mxu0 0.0
      %347 = vmatprep.subr.mxu0 0.0
      %348 = vmatpush2.msra.mxu0 0.0
      %349 = vmatprep.mubr.f32.mxu0 0.0
      %350 = vmatmul.mubr.f32.gmra.mxu0 %v161
      %v351 = vpop.f32.mrf.mxu0
      %v352 = vadd.f32 0.0, %v351
      %v353 = vpop.f32.mrf.mxu0
      %354 = vmatprep.mubr.f32.mxu0 0.0
      %355 = vmatmul.mubr.f32.gmra.mxu0 %v166
      %v356 = vpop.f32.mrf.mxu0
      %v357 = vadd.f32 0.0, %v356
      %v358 = vpop.f32.mrf.mxu0
      %359 = vdwg.mxu0
      %361 = vset.pattern.permute.xlu0 0
      %362 = vperm.xlu0 %361, %v352
      %v363 = vpop.permute.xlu0 %362
      %366 = vset.pattern.permute.xlu0 0
      %367 = vperm.xlu0 %366, %v357
      %v368 = vpop.permute.xlu0 %367
      %v370 = vlaneseq
      %v371 = vshrl.u32 %v370, 7
      %v372 = vsub.s32 0, %v371
      %v373 = vrot.slane %v234, %v372
      %v374 = vadd.f32 %v363, %v373
      %v375 = vadd.f32 %v368, %v373
      %v376 = vmul.f32 %v374, 0.2
      %v377 = vmul.f32 %v375, 0.2
      %v378 = vmax.f32 %v374, %v376
      %v379 = vmax.f32 %v375, %v377
      %v380 = vld [vmem:[#allocation6] sm:$0xff]
      %v381 = vld [vmem:[#allocation6 + $0x8] sm:$0xff]
      %v382 = vadd.f32 %v378, %v380
      %v383 = vadd.f32 %v379, %v381
      %v384 = vsel %vm201, %v382, -inf
      %385 = vmax.xlane.f32.xlu0 %v384
      %v386 = vpop.xlane.xlu0 %385
      %v387 = vsel %vm201, %v383, -inf
      %388 = vmax.xlane.f32.xlu0 %v387
      %v389 = vpop.xlane.xlu0 %388
      %v390 = vsub.f32 %v382, %v386
      %v391 = vsub.f32 %v383, %v389
      %v392 = vmul.f32 %v390, 1.442695
      %v393 = vpow.pop %v392
      %v394 = vmul.f32 %v391, 1.442695
      %v395 = vpow.pop %v394
      %v396 = vsel %vm201, %v393, 0.0
      %397 = vadd.xlane.f32.xlu0 %v396
      %v398 = vpop.xlane.xlu0 %397
      %v399 = vsel %vm201, %v395, 0.0
      %400 = vadd.xlane.f32.xlu0 %v399
      %v401 = vpop.xlane.xlu0 %400
      %v402 = vrcp.pop %v398
      %v403 = vrcp.pop %v401
      %v404 = vmul.f32 %v393, %v402
      %v405 = vmul.f32 %v395, %v403
      %s406 = smul.u32 %s219, 4
      %s407 = scalar_lea.vmem [#allocation2], %s406
      %v408 = vld [vmem:[%s407] sm:$0x1]
      %v409 = vlaneseq
      %v410 = vshrl.u32 %v409, 7
      %v411 = vsub.s32 0, %v410
      %v412 = vrot.slane %v408, %v411
      %v413 = vmul.f32 %v404, %v412
      %v414 = vmul.f32 %v405, %v412
      %v415 = vadd.f32 %v413, %v380
      %v416 = vadd.f32 %v414, %v381
      %v417 = vsel %vm201, %v415, -inf
      %418 = vmax.xlane.f32.xlu0 %v417
      %v419 = vpop.xlane.xlu0 %418
      %v420 = vsel %vm201, %v416, -inf
      %421 = vmax.xlane.f32.xlu0 %v420
      %v422 = vpop.xlane.xlu0 %421
      %v423 = vadd.f32 %v224, %v419
      %v424 = vadd.f32 %v225, %v422
      %s425 = sadd.s32 %s406, 1
      %s426 = scalar_lea.vmem [#allocation2], %s425
      %v427 = vld [vmem:[%s426] sm:$0x1]
      %v428 = vlaneseq
      %v429 = vshrl.u32 %v428, 7
      %v430 = vsub.s32 0, %v429
      %v431 = vrot.slane %v427, %v430
      %v432 = vmul.f32 %v404, %v431
      %v433 = vmul.f32 %v405, %v431
      %v434 = vadd.f32 %v432, %v380
      %v435 = vadd.f32 %v433, %v381
      %v436 = vsel %vm201, %v434, -inf
      %437 = vmax.xlane.f32.xlu0 %v436
      %v438 = vpop.xlane.xlu0 %437
      %v439 = vsel %vm201, %v435, -inf
      %440 = vmax.xlane.f32.xlu0 %v439
      %v441 = vpop.xlane.xlu0 %440
      %v442 = vadd.f32 %v226, %v438
      %v443 = vadd.f32 %v227, %v441
      %s444 = sadd.s32 %s406, 2
      %s445 = scalar_lea.vmem [#allocation2], %s444
      %v446 = vld [vmem:[%s445] sm:$0x1]
      %v447 = vlaneseq
      %v448 = vshrl.u32 %v447, 7
      %v449 = vsub.s32 0, %v448
      %v450 = vrot.slane %v446, %v449
      %v451 = vmul.f32 %v404, %v450
      %v452 = vmul.f32 %v405, %v450
      %v453 = vadd.f32 %v451, %v380
      %v454 = vadd.f32 %v452, %v381
      %v455 = vsel %vm201, %v453, -inf
      %456 = vmax.xlane.f32.xlu0 %v455
      %v457 = vpop.xlane.xlu0 %456
      %v458 = vsel %vm201, %v454, -inf
      %459 = vmax.xlane.f32.xlu0 %v458
      %v460 = vpop.xlane.xlu0 %459
      %v461 = vadd.f32 %v228, %v457
      %v462 = vadd.f32 %v229, %v460
      %s463 = sadd.s32 %s406, 3
      %s464 = scalar_lea.vmem [#allocation2], %s463
      %v465 = vld [vmem:[%s464] sm:$0x1]
      %v466 = vlaneseq
      %v467 = vshrl.u32 %v466, 7
      %v468 = vsub.s32 0, %v467
      %v469 = vrot.slane %v465, %v468
      %v470 = vmul.f32 %v404, %v469
      %v471 = vmul.f32 %v405, %v469
      %v472 = vadd.f32 %v470, %v380
      %v473 = vadd.f32 %v471, %v381
      %v474 = vsel %vm201, %v472, -inf
      %475 = vmax.xlane.f32.xlu0 %v474
      %v476 = vpop.xlane.xlu0 %475
      %v477 = vsel %vm201, %v473, -inf
      %478 = vmax.xlane.f32.xlu0 %v477
      %v479 = vpop.xlane.xlu0 %478
      %v480 = vadd.f32 %v230, %v476
      %v481 = vadd.f32 %v231, %v479
    $region34: #{tpu_custom_call.1} parent=1 // loop_footer
      %s223 = sadd.s32 1, %s219
    $region35: #{tpu_custom_call.1} parent=1 // loop_footer_branch
      %218 = sbr.rel target = $region31
    $region36: #{tpu_custom_call.1} parent=1 // loop_exit
      _
    %vm482 = vcmask 7168
    %v483 = vsel %vm482, %v224, %v226
    %v484 = vsel %vm482, %v225, %v227
    %vm485 = vcmask 15360
    %v486 = vsel %vm485, %v483, %v228
    %v487 = vsel %vm485, %v484, %v229
    %vm488 = vcmask 23552
    %v489 = vsel %vm488, %v486, %v230
    %v490 = vsel %vm488, %v487, %v231
    %v491 = vld [vmem:[%s3] sm:$0x1]
    %v493 = vlaneseq
    %v494 = vshrl.u32 %v493, 7
    %v495 = vsub.s32 0, %v494
    %v496 = vrot.slane %v491, %v495
    %v498 = vadd.f32 %v489, %v496
    %v499 = vadd.f32 %v490, %v496
    %v500 = vmax.f32 %v498, 0.0
    %v501 = vmax.f32 %v499, 0.0
    %vm502 = vcmask 31744
    %v503 = vsel %vm502, %v500, 0.0
    %v504 = vsel %vm502, %v501, 0.0
    %s505 = scalar_lea.vmem [#allocation8], 128
    %v506 = vld [vmem:[%s505] sm:$0xff]
    %v507 = vld [vmem:[%s505 + $0x8] sm:$0xff]
    %v508 = vld [vmem:[%s505 + $0x10] sm:$0xff]
    %v509 = vld [vmem:[%s505 + $0x18] sm:$0xff]
    %v510 = vld [vmem:[%s505 + $0x20] sm:$0xff]
    %v511 = vld [vmem:[%s505 + $0x28] sm:$0xff]
    %v512 = vld [vmem:[%s505 + $0x30] sm:$0xff]
    %v513 = vld [vmem:[%s505 + $0x38] sm:$0xff]
    %v514 = vld [vmem:[%s505 + $0x40] sm:$0xff]
    %v515 = vld [vmem:[%s505 + $0x48] sm:$0xff]
    %v516 = vld [vmem:[%s505 + $0x50] sm:$0xff]
    %v517 = vld [vmem:[%s505 + $0x58] sm:$0xff]
    %v518 = vld [vmem:[%s505 + $0x60] sm:$0xff]
    %v519 = vld [vmem:[%s505 + $0x68] sm:$0xff]
    %v520 = vld [vmem:[%s505 + $0x70] sm:$0xff]
    %v521 = vld [vmem:[%s505 + $0x78] sm:$0xff]
    %522 = vmatprep.subr.mxu0 0.0
    %523 = vmatpush1.msra.mxu0 %v521
    %524 = vmatprep.subr.mxu0 0.0
    %525 = vmatpush1.msra.mxu0 %v520
    %526 = vmatprep.subr.mxu0 0.0
    %527 = vmatpush1.msra.mxu0 %v519
    %528 = vmatprep.subr.mxu0 0.0
    %529 = vmatpush1.msra.mxu0 %v518
    %530 = vmatprep.subr.mxu0 0.0
    %531 = vmatpush1.msra.mxu0 %v517
    %532 = vmatprep.subr.mxu0 0.0
    %533 = vmatpush1.msra.mxu0 %v516
    %534 = vmatprep.subr.mxu0 0.0
    %535 = vmatpush1.msra.mxu0 %v515
    %536 = vmatprep.subr.mxu0 0.0
    %537 = vmatpush1.msra.mxu0 %v514
    %538 = vmatprep.subr.mxu0 0.0
    %539 = vmatpush1.msra.mxu0 %v513
    %540 = vmatprep.subr.mxu0 0.0
    %541 = vmatpush1.msra.mxu0 %v512
    %542 = vmatprep.subr.mxu0 0.0
    %543 = vmatpush1.msra.mxu0 %v511
    %544 = vmatprep.subr.mxu0 0.0
    %545 = vmatpush1.msra.mxu0 %v510
    %546 = vmatprep.subr.mxu0 0.0
    %547 = vmatpush1.msra.mxu0 %v509
    %548 = vmatprep.subr.mxu0 0.0
    %549 = vmatpush1.msra.mxu0 %v508
    %550 = vmatprep.subr.mxu0 0.0
    %551 = vmatpush1.msra.mxu0 %v507
    %552 = vmatprep.subr.mxu0 0.0
    %553 = vmatpush1.msra.mxu0 %v506
    %554 = vmatprep.subr.mxu0 0.0
    %555 = vmatpush2.msra.mxu0 0.0
    %556 = vmatprep.subr.mxu0 0.0
    %557 = vmatpush2.msra.mxu0 0.0
    %558 = vmatprep.subr.mxu0 0.0
    %559 = vmatpush2.msra.mxu0 0.0
    %560 = vmatprep.subr.mxu0 0.0
    %561 = vmatpush2.msra.mxu0 0.0
    %562 = vmatprep.subr.mxu0 0.0
    %563 = vmatpush2.msra.mxu0 0.0
    %564 = vmatprep.subr.mxu0 0.0
    %565 = vmatpush2.msra.mxu0 0.0
    %566 = vmatprep.subr.mxu0 0.0
    %567 = vmatpush2.msra.mxu0 0.0
    %568 = vmatprep.subr.mxu0 0.0
    %569 = vmatpush2.msra.mxu0 0.0
    %570 = vmatprep.subr.mxu0 0.0
    %571 = vmatpush2.msra.mxu0 0.0
    %572 = vmatprep.subr.mxu0 0.0
    %573 = vmatpush2.msra.mxu0 0.0
    %574 = vmatprep.subr.mxu0 0.0
    %575 = vmatpush2.msra.mxu0 0.0
    %576 = vmatprep.subr.mxu0 0.0
    %577 = vmatpush2.msra.mxu0 0.0
    %578 = vmatprep.subr.mxu0 0.0
    %579 = vmatpush2.msra.mxu0 0.0
    %580 = vmatprep.subr.mxu0 0.0
    %581 = vmatpush2.msra.mxu0 0.0
    %582 = vmatprep.subr.mxu0 0.0
    %583 = vmatpush2.msra.mxu0 0.0
    %584 = vmatprep.subr.mxu0 0.0
    %585 = vmatpush2.msra.mxu0 0.0
    %586 = vmatprep.mubr.f32.mxu0 0.0
    %587 = vmatmul.mubr.f32.gmra.mxu0 %v503
    %v588 = vpop.f32.mrf.mxu0
    %v589 = vadd.f32 0.0, %v588
    %v590 = vpop.f32.mrf.mxu0
    %591 = vmatprep.mubr.f32.mxu0 0.0
    %592 = vmatmul.mubr.f32.gmra.mxu0 %v504
    %v593 = vpop.f32.mrf.mxu0
    %v594 = vadd.f32 0.0, %v593
    %v595 = vpop.f32.mrf.mxu0
    %596 = vdwg.mxu0
    %597 = vxpose.xlu0.b32.start [1/16] %v589, 128
    %598 = vxpose.xlu0.b32.cont [2/16] %v594, 128
    %599 = vxpose.xlu0.b32.cont [3/16] 0.0, 128
    %600 = vxpose.xlu0.b32.cont [4/16] 0.0, 128
    %601 = vxpose.xlu0.b32.cont [5/16] 0.0, 128
    %602 = vxpose.xlu0.b32.cont [6/16] 0.0, 128
    %603 = vxpose.xlu0.b32.cont [7/16] 0.0, 128
    %604 = vxpose.xlu0.b32.cont [8/16] 0.0, 128
    %605 = vxpose.xlu0.b32.cont [9/16] 0.0, 128
    %606 = vxpose.xlu0.b32.cont [10/16] 0.0, 128
    %607 = vxpose.xlu0.b32.cont [11/16] 0.0, 128
    %608 = vxpose.xlu0.b32.cont [12/16] 0.0, 128
    %609 = vxpose.xlu0.b32.cont [13/16] 0.0, 128
    %610 = vxpose.xlu0.b32.cont [14/16] 0.0, 128
    %611 = vxpose.xlu0.b32.cont [15/16] 0.0, 128
    %612 = vxpose.xlu0.b32.end [16/16] 0.0, 128
    %v613 = vpop.trf.xlu0
    %v614 = vpop.trf.xlu0
    %v615 = vpop.trf.xlu0
    %v616 = vpop.trf.xlu0
    %v617 = vpop.trf.xlu0
    %v618 = vpop.trf.xlu0
    %v619 = vpop.trf.xlu0
    %v620 = vpop.trf.xlu0
    %v621 = vpop.trf.xlu0
    %v622 = vpop.trf.xlu0
    %v623 = vpop.trf.xlu0
    %v624 = vpop.trf.xlu0
    %v625 = vpop.trf.xlu0
    %v626 = vpop.trf.xlu0
    %v627 = vpop.trf.xlu0
    %v628 = vpop.trf.xlu0
    %629 = vst.msk [vmem:[#allocation2] sm:$0xff] %vm201, %v613
    %630 = vst.msk [vmem:[#allocation2 + $0x8] sm:$0xff] %vm201, %v614
    %631 = vst.msk [vmem:[#allocation2 + $0x10] sm:$0xff] %vm201, %v615
    %632 = vst.msk [vmem:[#allocation2 + $0x18] sm:$0xff] %vm201, %v616
    %633 = vst.msk [vmem:[#allocation2 + $0x20] sm:$0xff] %vm201, %v617
    %634 = vst.msk [vmem:[#allocation2 + $0x28] sm:$0xff] %vm201, %v618
    %635 = vst.msk [vmem:[#allocation2 + $0x30] sm:$0xff] %vm201, %v619
    %636 = vst.msk [vmem:[#allocation2 + $0x38] sm:$0xff] %vm201, %v620
    %637 = vst.msk [vmem:[#allocation2 + $0x40] sm:$0xff] %vm201, %v621
    %638 = vst.msk [vmem:[#allocation2 + $0x48] sm:$0xff] %vm201, %v622
    %639 = vst.msk [vmem:[#allocation2 + $0x50] sm:$0xff] %vm201, %v623
    %640 = vst.msk [vmem:[#allocation2 + $0x58] sm:$0xff] %vm201, %v624
    %641 = vst.msk [vmem:[#allocation2 + $0x60] sm:$0xff] %vm201, %v625
    %642 = vst.msk [vmem:[#allocation2 + $0x68] sm:$0xff] %vm201, %v626
    %643 = vst.msk [vmem:[#allocation2 + $0x70] sm:$0xff] %vm201, %v627
    %644 = vst.msk [vmem:[#allocation2 + $0x78] sm:$0xff] %vm201, %v628
    loop: start=0, step=1, limit=8
    $region37: #{tpu_custom_call.1} parent=1 // loop_pre_header
      _
    $region38: #{tpu_custom_call.1} parent=1 // loop_header
      %s646 = sphi 0, %s650
      %p647 = scmp.ge.s32.totalorder %s646, 8
      %v651 = vphi 0.0, %v850
      %v652 = vphi 0.0, %v851
      %v653 = vphi 0.0, %v869
      %v654 = vphi 0.0, %v870
      %v655 = vphi 0.0, %v888
      %v656 = vphi 0.0, %v889
      %v657 = vphi 0.0, %v907
      %v658 = vphi 0.0, %v908
    $region39: #{tpu_custom_call.1} parent=1 // loop_header_branch
      %649 = sbr.rel (%p647) target = $region43
    $region40: #{tpu_custom_call.1} parent=1 // loop_body
      %s659 = sadd.s32 %s646, 32
      %s660 = scalar_lea.vmem [#allocation2], %s659
      %v661 = vld [vmem:[%s660] sm:$0x1]
      %s662 = sadd.s32 %s646, 40
      %v663 = vstv %s662
      %vm664 = vcmp.eq.s32.totalorder %v60, %v663
      %vm665 = vcmp.eq.s32.totalorder %v61, %v663
      %vm666 = vcmp.eq.s32.totalorder %v62, %v663
      %vm667 = vcmp.eq.s32.totalorder %v63, %v663
      %vm668 = vcmp.eq.s32.totalorder %v64, %v663
      %vm669 = vcmp.eq.s32.totalorder %v65, %v663
      %vm670 = vcmp.eq.s32.totalorder %v66, %v663
      %vm671 = vcmp.eq.s32.totalorder %v67, %v663
      %vm672 = vcmp.eq.s32.totalorder %v68, %v663
      %vm673 = vcmp.eq.s32.totalorder %v69, %v663
      %vm674 = vcmp.eq.s32.totalorder %v70, %v663
      %vm675 = vcmp.eq.s32.totalorder %v71, %v663
      %vm676 = vcmp.eq.s32.totalorder %v72, %v663
      %vm677 = vcmp.eq.s32.totalorder %v73, %v663
      %vm678 = vcmp.eq.s32.totalorder %v74, %v663
      %vm679 = vcmp.eq.s32.totalorder %v75, %v663
      %v680 = vsel %vm664, 1, 0
      %v681 = vsel %vm665, 1, 0
      %v682 = vsel %vm666, 1, 0
      %v683 = vsel %vm667, 1, 0
      %v684 = vsel %vm668, 1, 0
      %v685 = vsel %vm669, 1, 0
      %v686 = vsel %vm670, 1, 0
      %v687 = vsel %vm671, 1, 0
      %v688 = vsel %vm672, 1, 0
      %v689 = vsel %vm673, 1, 0
      %v690 = vsel %vm674, 1, 0
      %v691 = vsel %vm675, 1, 0
      %v692 = vsel %vm676, 1, 0
      %v693 = vsel %vm677, 1, 0
      %v694 = vsel %vm678, 1, 0
      %v695 = vsel %vm679, 1, 0
      %v696 = vcvt.s32.f32 %v680
      %v697 = vcvt.s32.f32 %v681
      %v698 = vcvt.s32.f32 %v682
      %v699 = vcvt.s32.f32 %v683
      %v700 = vcvt.s32.f32 %v684
      %v701 = vcvt.s32.f32 %v685
      %v702 = vcvt.s32.f32 %v686
      %v703 = vcvt.s32.f32 %v687
      %v704 = vcvt.s32.f32 %v688
      %v705 = vcvt.s32.f32 %v689
      %v706 = vcvt.s32.f32 %v690
      %v707 = vcvt.s32.f32 %v691
      %v708 = vcvt.s32.f32 %v692
      %v709 = vcvt.s32.f32 %v693
      %v710 = vcvt.s32.f32 %v694
      %v711 = vcvt.s32.f32 %v695
      %712 = vmatprep.subr.mxu0 0.0
      %713 = vmatpush1.msra.mxu0 %v711
      %714 = vmatprep.subr.mxu0 0.0
      %715 = vmatpush1.msra.mxu0 %v710
      %716 = vmatprep.subr.mxu0 0.0
      %717 = vmatpush1.msra.mxu0 %v709
      %718 = vmatprep.subr.mxu0 0.0
      %719 = vmatpush1.msra.mxu0 %v708
      %720 = vmatprep.subr.mxu0 0.0
      %721 = vmatpush1.msra.mxu0 %v707
      %722 = vmatprep.subr.mxu0 0.0
      %723 = vmatpush1.msra.mxu0 %v706
      %724 = vmatprep.subr.mxu0 0.0
      %725 = vmatpush1.msra.mxu0 %v705
      %726 = vmatprep.subr.mxu0 0.0
      %727 = vmatpush1.msra.mxu0 %v704
      %728 = vmatprep.subr.mxu0 0.0
      %729 = vmatpush1.msra.mxu0 %v703
      %730 = vmatprep.subr.mxu0 0.0
      %731 = vmatpush1.msra.mxu0 %v702
      %732 = vmatprep.subr.mxu0 0.0
      %733 = vmatpush1.msra.mxu0 %v701
      %734 = vmatprep.subr.mxu0 0.0
      %735 = vmatpush1.msra.mxu0 %v700
      %736 = vmatprep.subr.mxu0 0.0
      %737 = vmatpush1.msra.mxu0 %v699
      %738 = vmatprep.subr.mxu0 0.0
      %739 = vmatpush1.msra.mxu0 %v698
      %740 = vmatprep.subr.mxu0 0.0
      %741 = vmatpush1.msra.mxu0 %v697
      %742 = vmatprep.subr.mxu0 0.0
      %743 = vmatpush1.msra.mxu0 %v696
      %744 = vmatprep.subr.mxu0 0.0
      %745 = vmatpush2.msra.mxu0 0.0
      %746 = vmatprep.subr.mxu0 0.0
      %747 = vmatpush2.msra.mxu0 0.0
      %748 = vmatprep.subr.mxu0 0.0
      %749 = vmatpush2.msra.mxu0 0.0
      %750 = vmatprep.subr.mxu0 0.0
      %751 = vmatpush2.msra.mxu0 0.0
      %752 = vmatprep.subr.mxu0 0.0
      %753 = vmatpush2.msra.mxu0 0.0
      %754 = vmatprep.subr.mxu0 0.0
      %755 = vmatpush2.msra.mxu0 0.0
      %756 = vmatprep.subr.mxu0 0.0
      %757 = vmatpush2.msra.mxu0 0.0
      %758 = vmatprep.subr.mxu0 0.0
      %759 = vmatpush2.msra.mxu0 0.0
      %760 = vmatprep.subr.mxu0 0.0
      %761 = vmatpush2.msra.mxu0 0.0
      %762 = vmatprep.subr.mxu0 0.0
      %763 = vmatpush2.msra.mxu0 0.0
      %764 = vmatprep.subr.mxu0 0.0
      %765 = vmatpush2.msra.mxu0 0.0
      %766 = vmatprep.subr.mxu0 0.0
      %767 = vmatpush2.msra.mxu0 0.0
      %768 = vmatprep.subr.mxu0 0.0
      %769 = vmatpush2.msra.mxu0 0.0
      %770 = vmatprep.subr.mxu0 0.0
      %771 = vmatpush2.msra.mxu0 0.0
      %772 = vmatprep.subr.mxu0 0.0
      %773 = vmatpush2.msra.mxu0 0.0
      %774 = vmatprep.subr.mxu0 0.0
      %775 = vmatpush2.msra.mxu0 0.0
      %776 = vmatprep.mubr.f32.mxu0 0.0
      %777 = vmatmul.mubr.f32.gmra.mxu0 %v589
      %v778 = vpop.f32.mrf.mxu0
      %v779 = vadd.f32 0.0, %v778
      %v780 = vpop.f32.mrf.mxu0
      %781 = vmatprep.mubr.f32.mxu0 0.0
      %782 = vmatmul.mubr.f32.gmra.mxu0 %v594
      %v783 = vpop.f32.mrf.mxu0
      %v784 = vadd.f32 0.0, %v783
      %v785 = vpop.f32.mrf.mxu0
      %786 = vdwg.mxu0
      %788 = vset.pattern.permute.xlu0 0
      %789 = vperm.xlu0 %788, %v779
      %v790 = vpop.permute.xlu0 %789
      %793 = vset.pattern.permute.xlu0 0
      %794 = vperm.xlu0 %793, %v784
      %v795 = vpop.permute.xlu0 %794
      %v797 = vlaneseq
      %v798 = vshrl.u32 %v797, 7
      %v799 = vsub.s32 0, %v798
      %v800 = vrot.slane %v661, %v799
      %v801 = vadd.f32 %v790, %v800
      %v802 = vadd.f32 %v795, %v800
      %v803 = vmul.f32 %v801, 0.2
      %v804 = vmul.f32 %v802, 0.2
      %v805 = vmax.f32 %v801, %v803
      %v806 = vmax.f32 %v802, %v804
      %v807 = vld [vmem:[#allocation6] sm:$0xff]
      %v808 = vld [vmem:[#allocation6 + $0x8] sm:$0xff]
      %v809 = vadd.f32 %v805, %v807
      %v810 = vadd.f32 %v806, %v808
      %v811 = vsel %vm201, %v809, -inf
      %812 = vmax.xlane.f32.xlu0 %v811
      %v813 = vpop.xlane.xlu0 %812
      %v814 = vsel %vm201, %v810, -inf
      %815 = vmax.xlane.f32.xlu0 %v814
      %v816 = vpop.xlane.xlu0 %815
      %v817 = vsub.f32 %v809, %v813
      %v818 = vsub.f32 %v810, %v816
      %v819 = vmul.f32 %v817, 1.442695
      %v820 = vpow.pop %v819
      %v821 = vmul.f32 %v818, 1.442695
      %v822 = vpow.pop %v821
      %v823 = vsel %vm201, %v820, 0.0
      %824 = vadd.xlane.f32.xlu0 %v823
      %v825 = vpop.xlane.xlu0 %824
      %v826 = vsel %vm201, %v822, 0.0
      %827 = vadd.xlane.f32.xlu0 %v826
      %v828 = vpop.xlane.xlu0 %827
      %v829 = vrcp.pop %v825
      %v830 = vrcp.pop %v828
      %v831 = vmul.f32 %v820, %v829
      %v832 = vmul.f32 %v822, %v830
      %s833 = smul.u32 %s646, 4
      %s834 = scalar_lea.vmem [#allocation2], %s833
      %v835 = vld [vmem:[%s834] sm:$0x1]
      %v836 = vlaneseq
      %v837 = vshrl.u32 %v836, 7
      %v838 = vsub.s32 0, %v837
      %v839 = vrot.slane %v835, %v838
      %v840 = vmul.f32 %v831, %v839
      %v841 = vmul.f32 %v832, %v839
      %v842 = vadd.f32 %v840, %v807
      %v843 = vadd.f32 %v841, %v808
      %v844 = vsel %vm201, %v842, -inf
      %845 = vmax.xlane.f32.xlu0 %v844
      %v846 = vpop.xlane.xlu0 %845
      %v847 = vsel %vm201, %v843, -inf
      %848 = vmax.xlane.f32.xlu0 %v847
      %v849 = vpop.xlane.xlu0 %848
      %v850 = vadd.f32 %v651, %v846
      %v851 = vadd.f32 %v652, %v849
      %s852 = sadd.s32 %s833, 1
      %s853 = scalar_lea.vmem [#allocation2], %s852
      %v854 = vld [vmem:[%s853] sm:$0x1]
      %v855 = vlaneseq
      %v856 = vshrl.u32 %v855, 7
      %v857 = vsub.s32 0, %v856
      %v858 = vrot.slane %v854, %v857
      %v859 = vmul.f32 %v831, %v858
      %v860 = vmul.f32 %v832, %v858
      %v861 = vadd.f32 %v859, %v807
      %v862 = vadd.f32 %v860, %v808
      %v863 = vsel %vm201, %v861, -inf
      %864 = vmax.xlane.f32.xlu0 %v863
      %v865 = vpop.xlane.xlu0 %864
      %v866 = vsel %vm201, %v862, -inf
      %867 = vmax.xlane.f32.xlu0 %v866
      %v868 = vpop.xlane.xlu0 %867
      %v869 = vadd.f32 %v653, %v865
      %v870 = vadd.f32 %v654, %v868
      %s871 = sadd.s32 %s833, 2
      %s872 = scalar_lea.vmem [#allocation2], %s871
      %v873 = vld [vmem:[%s872] sm:$0x1]
      %v874 = vlaneseq
      %v875 = vshrl.u32 %v874, 7
      %v876 = vsub.s32 0, %v875
      %v877 = vrot.slane %v873, %v876
      %v878 = vmul.f32 %v831, %v877
      %v879 = vmul.f32 %v832, %v877
      %v880 = vadd.f32 %v878, %v807
      %v881 = vadd.f32 %v879, %v808
      %v882 = vsel %vm201, %v880, -inf
      %883 = vmax.xlane.f32.xlu0 %v882
      %v884 = vpop.xlane.xlu0 %883
      %v885 = vsel %vm201, %v881, -inf
      %886 = vmax.xlane.f32.xlu0 %v885
      %v887 = vpop.xlane.xlu0 %886
      %v888 = vadd.f32 %v655, %v884
      %v889 = vadd.f32 %v656, %v887
      %s890 = sadd.s32 %s833, 3
      %s891 = scalar_lea.vmem [#allocation2], %s890
      %v892 = vld [vmem:[%s891] sm:$0x1]
      %v893 = vlaneseq
      %v894 = vshrl.u32 %v893, 7
      %v895 = vsub.s32 0, %v894
      %v896 = vrot.slane %v892, %v895
      %v897 = vmul.f32 %v831, %v896
      %v898 = vmul.f32 %v832, %v896
      %v899 = vadd.f32 %v897, %v807
      %v900 = vadd.f32 %v898, %v808
      %v901 = vsel %vm201, %v899, -inf
      %902 = vmax.xlane.f32.xlu0 %v901
      %v903 = vpop.xlane.xlu0 %902
      %v904 = vsel %vm201, %v900, -inf
      %905 = vmax.xlane.f32.xlu0 %v904
      %v906 = vpop.xlane.xlu0 %905
      %v907 = vadd.f32 %v657, %v903
      %v908 = vadd.f32 %v658, %v906
    $region41: #{tpu_custom_call.1} parent=1 // loop_footer
      %s650 = sadd.s32 1, %s646
    $region42: #{tpu_custom_call.1} parent=1 // loop_footer_branch
      %645 = sbr.rel target = $region38
    $region43: #{tpu_custom_call.1} parent=1 // loop_exit
      _
    %v909 = vsel %vm482, %v651, %v653
    %v910 = vsel %vm482, %v652, %v654
    %v911 = vsel %vm485, %v909, %v655
    %v912 = vsel %vm485, %v910, %v656
    %v913 = vsel %vm488, %v911, %v657
    %v914 = vsel %vm488, %v912, %v658
    %s915 = scalar_lea.vmem %s3, 1
    %v916 = vld [vmem:[%s915] sm:$0x1]
    %v918 = vlaneseq
    %v919 = vshrl.u32 %v918, 7
    %v920 = vsub.s32 0, %v919
    %v921 = vrot.slane %v916, %v920
    %v923 = vadd.f32 %v913, %v921
    %v924 = vadd.f32 %v914, %v921
    %v925 = vsel %vm502, %v923, -inf
    %926 = vmax.xlane.f32.xlu0 %v925
    %v927 = vpop.xlane.xlu0 %926
    %v928 = vsel %vm502, %v924, -inf
    %929 = vmax.xlane.f32.xlu0 %v928
    %v930 = vpop.xlane.xlu0 %929
    %v931 = vsub.f32 %v923, %v927
    %v932 = vsub.f32 %v924, %v930
    %v933 = vmul.f32 %v931, 1.442695
    %v934 = vpow.pop %v933
    %v935 = vmul.f32 %v932, 1.442695
    %v936 = vpow.pop %v935
    %v937 = vsel %vm502, %v934, 0.0
    %938 = vadd.xlane.f32.xlu0 %v937
    %v939 = vpop.xlane.xlu0 %938
    %v940 = vsel %vm502, %v936, 0.0
    %941 = vadd.xlane.f32.xlu0 %v940
    %v942 = vpop.xlane.xlu0 %941
    %v943 = vlog2.pop %v939
    %v944 = vmul.f32 %v943, 0.6931472
    %v945 = vlog2.pop %v942
    %v946 = vmul.f32 %v945, 0.6931472
    %v947 = vadd.f32 %v944, %v927
    %v948 = vadd.f32 %v946, %v930
    %v949 = vsub.f32 %v923, %v947
    %v950 = vsub.f32 %v924, %v948
    %v951 = vsel %vm502, %v949, 0.0
    %v952 = vsel %vm502, %v950, 0.0
    %953 = vst [vmem:[#allocation9] sm:$0xff] %v951
    %954 = vst [vmem:[#allocation9 + $0x8] sm:$0xff] %v952
    // Predicated region
    $region44: #{tpu_custom_call.1} parent=1 // pred_check
      _
    $region45: #{tpu_custom_call.1} parent=1 // pred_check_branch
      %956 = sbr.rel (0) target = $region47
    $region46: #{tpu_custom_call.1} parent=1 // pred_region
      %s958 = ssub.s32 256, 256
      %959 = vsyncadd [#allocation5], %s958
      %s960 = sshll.u32 [#allocation9], 4
      %s961 = int_to_ptr.vmem [resolvable:$true] %s960
      %966 = dma.vmem_to_hbm [thread:$0]  %s961, 256, %s4, [#allocation5], 128, 128, 8
    $region47: #{tpu_custom_call.1} parent=1 // pred_fallthru
      _
    // Predicated region
    $region48: #{tpu_custom_call.1} parent=1 // pred_check
      _
    $region49: #{tpu_custom_call.1} parent=1 // pred_check_branch
      %968 = sbr.rel (0) target = $region51
    $region50: #{tpu_custom_call.1} parent=1 // pred_region
      %969 = dma.done [#allocation5], 256
    $region51: #{tpu_custom_call.1} parent=1 // pred_fallthru
      _
    %970 = vsyncpa [#allocation4], 1
    %971 = vsyncpa [#allocation7], 1
    %972 = vsyncpa [#allocation5], 1

</llo_original>
